<compile_context>
chip_gen: v7x
topology: tpu7x:2x2x1
jax: 0.10.0
libtpu: 0.0.40
codegen_flags: <defaults>
</compile_context>

<pallas_src>
import functools

import jax
import jax.numpy as jnp
from jax.experimental import pallas as pl
from jax.experimental.pallas import tpu as pltpu


# Large finite negative used for masked scores.  A finite value (instead of
# -inf) keeps the online-softmax rescale exp(m_old - m_new) NaN-free even when
# an entire Sk tile is masked.  Note: a row masked at EVERY key position
# returns mean(V) here instead of the NaN the torch reference produces.
_MASK_VALUE = -0.7 * float(jnp.finfo(jnp.float32).max)


def _flash_sdpa_kernel(*refs, scale, has_mask, compute_dtype, kv_resident, tk):
    if has_mask:
        q_ref, k_ref, v_ref, bias_ref, o_ref, q_sc, m_sc, l_sc, acc_sc = refs
    else:
        q_ref, k_ref, v_ref, o_ref, q_sc, m_sc, l_sc, acc_sc = refs
        bias_ref = None

    ki = pl.program_id(2)

    @pl.when(ki == 0)
    def _init():
        m_sc[...] = jnp.full_like(m_sc, _MASK_VALUE)
        l_sc[...] = jnp.zeros_like(l_sc)
        acc_sc[...] = jnp.zeros_like(acc_sc)
        # Hoisted out of the Sk loop: the Q block is identical for every ki,
        # so the scale fold + matmul-dtype cast are done once per q tile.
        q_sc[...] = (q_ref[...].astype(jnp.float32) * scale).astype(q_sc.dtype)

    q = q_sc[...]                                    # (G, tq, D), compute dtype

    if kv_resident:
        # K/V blocks hold the FULL key length (DMA'd once per batch*head
        # group); slice out the current Sk tile from VMEM.
        start = pl.multiple_of(ki * tk, tk)
        k = k_ref[:, pl.ds(start, tk), :]            # (G, tk, D)
        v = v_ref[:, pl.ds(start, tk), :]
    else:
        k = k_ref[...]                               # (G, tk, D)
        v = v_ref[...]
    if k.dtype != compute_dtype:
        k = k.astype(compute_dtype)
    if v.dtype != compute_dtype:
        v = v.astype(compute_dtype)

    # scores[g, q, k] = sum_d q[g, q, d] * k[g, k, d]   (no explicit K transpose)
    scores = jax.lax.dot_general(
        q, k,
        dimension_numbers=(((2,), (2,)), ((0,), (0,))),
        preferred_element_type=jnp.float32)          # (G, tq, tk) f32

    if has_mask:
        # Additive bias (0 or -huge), (G, 1, tk) or (G, tq, tk); broadcasts.
        scores = scores + bias_ref[...]

    # Online softmax update.
    m_prev = m_sc[...]                                           # (G, tq, 1)
    m_new = jnp.maximum(m_prev, jnp.max(scores, axis=-1, keepdims=True))
    alpha = jnp.exp(m_prev - m_new)
    p = jnp.exp(scores - m_new)                                  # (G, tq, tk)
    l_sc[...] = alpha * l_sc[...] + jnp.sum(p, axis=-1, keepdims=True)

    pv = jax.lax.dot_general(
        p.astype(compute_dtype), v,
        dimension_numbers=(((2,), (1,)), ((0,), (0,))),
        preferred_element_type=jnp.float32)                      # (G, tq, D)
    acc_sc[...] = alpha * acc_sc[...] + pv
    m_sc[...] = m_new

    @pl.when(ki == pl.num_programs(2) - 1)
    def _finalize():
        # Single reciprocal per output tile, off the Sk inner loop.
        inv_l = pl.reciprocal(l_sc[...], approx=False)
        o_ref[...] = (acc_sc[...] * inv_l).astype(o_ref.dtype)


def _pick_tile_sublane(size, target):
    """Largest multiple of 8 <= target that divides `size` (query/sublane axis)."""
    if size <= target:
        return size
    t = (min(target, size) // 8) * 8
    while t >= 8:
        if size % t == 0:
            return t
        t -= 8
    return size  # awkward size -> full-extent block (always legal)


def _pick_tile_lane(size, target):
    """Largest multiple of 128 <= target that divides `size` (key/lane axis)."""
    if size <= target:
        return size
    t = (min(target, size) // 128) * 128
    while t >= 128:
        if size % t == 0:
            return t
        t -= 128
    return size  # awkward size -> full-extent block


def _step_vmem_bytes(g, tq, tk, d, sk, mq_blk, in_itemsize, mm_itemsize,
                     has_mask, kv_resident):
    """Rough per-grid-step VMEM footprint (double-buffered blocks + scratch)."""
    kv_len = sk if kv_resident else tk
    b = 2 * g * tq * d * in_itemsize            # Q blocks (double-buffered)
    b += 2 * 2 * g * kv_len * d * in_itemsize   # K + V blocks
    b += 2 * g * tq * d * in_itemsize           # output blocks
    if has_mask:
        b += 2 * g * mq_blk * max(tk, 128) * 4  # f32 additive-bias blocks
    b += g * tq * d * 4                         # f32 accumulator scratch
    b += 2 * g * tq * 128 * 4                   # m / l scratch (lane padded)
    b += g * tq * d * mm_itemsize               # cached scaled/cast Q scratch
    b += 2 * g * tq * max(tk, 128) * 4          # f32 score / prob temporaries
    return b


def _pick_group(bh, fits_fn, min_outer):
    """Largest divisor of BH that fits, preferring parallel extent >= min_outer."""
    divs = [g for g in range(1, bh + 1) if bh % g == 0]
    fitting = [g for g in divs if fits_fn(g)]
    if not fitting:
        return 1
    if min_outer > 1:
        par = [g for g in fitting if bh // g >= min_outer]
        if par:
            return max(par)
    return max(fitting)


def _chip_budgets():
    """(physical VMEM, group-picker budget, scoped-vmem cap, default tq target)."""
    phys = None
    try:
        info = pltpu.get_tpu_info()
        phys = getattr(info, "vmem_capacity_bytes", None)
    except Exception:
        phys = None
    if phys is None:
        phys = 64 * 1024 * 1024              # conservative (v7x-sized) default
    phys = int(phys)
    if phys >= 100 * 1024 * 1024:
        # v5e / v6e: 128 MiB physical VMEM -> generous budgets, bigger q tiles.
        return phys, 40 * 1024 * 1024, 96 * 1024 * 1024, 512
    # v7x (64 MiB physical) or unknown: leave headroom for compiler scratch.
    return phys, 20 * 1024 * 1024, 48 * 1024 * 1024, 256


def scaled_dot_product_attention(Q, K, V, padding_mask=None, *, d_head=None,
                                 dropout_p=0.0, tq=None, tk=None,
                                 matmul_dtype="auto", group_size=None,
                                 interpret=False):
    """Q, K, V: (B, H, S, D).  padding_mask: bool, broadcastable to
    (B, H, Sq, Sk), True == masked out (matches torch.masked_fill).
    matmul_dtype: "auto" (default, bf16 MXU operands for f32 inputs with f32
    accumulation), None (keep input dtype), or an explicit dtype.
    Returns (B, H, Sq, D)."""
    if dropout_p:
        raise NotImplementedError(
            "attention-prob dropout not implemented (eval mode only)")

    B, H, Sq, D = Q.shape
    Sk = K.shape[2]
    if K.shape != (B, H, Sk, D) or V.shape != (B, H, Sk, D):
        raise ValueError("Q/K/V shape mismatch")
    if d_head is None:
        d_head = D
    scale = 1.0 / float(d_head) ** 0.5

    BH = B * H
    q = Q.reshape(BH, Sq, D)
    k = K.reshape(BH, Sk, D)
    v = V.reshape(BH, Sk, D)

    phys_vmem, group_budget, vmem_cap, tq_target = _chip_budgets()

    tq = _pick_tile_sublane(Sq, tq_target) if tq is None else tq
    tk = _pick_tile_lane(Sk, 256) if tk is None else tk   # keep MXU depth on PV
    if Sq % tq != 0 or Sk % tk != 0:
        raise ValueError("tile sizes must divide the sequence lengths")

    # ---- compact additive mask bias (no (BH, Sq, Sk) materialization) ----
    has_mask = padding_mask is not None
    bias_arr = None
    mq = 1
    if has_mask:
        pm = jnp.asarray(padding_mask)
        if pm.ndim > 4:
            raise ValueError("padding_mask must be broadcastable to (B, H, Sq, Sk)")
        while pm.ndim < 4:
            pm = pm[jnp.newaxis]
        # Keep a size-1 query axis compact (the common key-padding case).
        mq = 1 if pm.shape[2] == 1 else Sq
        pm = jnp.broadcast_to(pm, (B, H, mq, Sk))
        bias_arr = jnp.where(pm, _MASK_VALUE, 0.0).astype(jnp.float32)
        bias_arr = bias_arr.reshape(BH, mq, Sk)
    mq_blk = 1 if mq == 1 else tq

    # ---- matmul (MXU operand) dtype: bf16 by default for f32 inputs ----
    if isinstance(matmul_dtype, str) and matmul_dtype == "auto":
        compute_dtype = jnp.bfloat16 if Q.dtype == jnp.float32 else Q.dtype
    elif matmul_dtype is None:
        compute_dtype = Q.dtype
    else:
        compute_dtype = matmul_dtype
    compute_dtype = jnp.dtype(compute_dtype)

    in_itemsize = jnp.dtype(Q.dtype).itemsize
    mm_itemsize = compute_dtype.itemsize

    def fits(g, resident):
        return _step_vmem_bytes(g, tq, tk, D, Sk, mq_blk, in_itemsize,
                                mm_itemsize, has_mask, resident) <= group_budget

    # Keep both v7x TensorCores busy: when Sq fits a single tile, ensure the
    # parallel (batch*head) grid extent stays >= 2 if possible.
    min_outer = 2 if (Sq // tq == 1 and BH >= 2) else 1
    want_resident = (Sq // tq > 1) and (Sk // tk > 1)

    kv_resident = False
    if group_size is None:
        if want_resident:
            g_res = _pick_group(BH, lambda g: fits(g, True), min_outer)
            if fits(g_res, True):
                G, kv_resident = g_res, True
        if not kv_resident:
            G = _pick_group(BH, lambda g: fits(g, False), min_outer)
    else:
        G = group_size
        kv_resident = want_resident and fits(G, True)
    if BH % G != 0:
        raise ValueError("group_size must divide B*H")

    grid = (BH // G, Sq // tq, Sk // tk)

    if kv_resident:
        # Full-Sk K/V blocks, constant index across (qi, ki): DMA'd once per
        # batch*head group instead of once per q tile.
        k_spec = pl.BlockSpec((G, Sk, D), lambda b, qi, ki: (b, 0, 0))
        v_spec = pl.BlockSpec((G, Sk, D), lambda b, qi, ki: (b, 0, 0))
    else:
        k_spec = pl.BlockSpec((G, tk, D), lambda b, qi, ki: (b, ki, 0))
        v_spec = pl.BlockSpec((G, tk, D), lambda b, qi, ki: (b, ki, 0))

    in_specs = [
        pl.BlockSpec((G, tq, D), lambda b, qi, ki: (b, qi, 0)),   # Q
        k_spec,                                                   # K
        v_spec,                                                   # V
    ]
    operands = [q, k, v]
    if has_mask:
        if mq == 1:
            in_specs.append(pl.BlockSpec((G, 1, tk), lambda b, qi, ki: (b, 0, ki)))
        else:
            in_specs.append(pl.BlockSpec((G, tq, tk), lambda b, qi, ki: (b, qi, ki)))
        operands.append(bias_arr)

    out_spec = pl.BlockSpec((G, tq, D), lambda b, qi, ki: (b, qi, 0))

    scratch_shapes = [
        pltpu.VMEM((G, tq, D), compute_dtype),   # cached scaled/cast Q
        pltpu.VMEM((G, tq, 1), jnp.float32),     # running max  m
        pltpu.VMEM((G, tq, 1), jnp.float32),     # running sum  l
        pltpu.VMEM((G, tq, D), jnp.float32),     # output accumulator
    ]

    kernel = functools.partial(
        _flash_sdpa_kernel, scale=scale, has_mask=has_mask,
        compute_dtype=compute_dtype, kv_resident=kv_resident, tk=tk)

    est = _step_vmem_bytes(G, tq, tk, D, Sk, mq_blk, in_itemsize, mm_itemsize,
                           has_mask, kv_resident)
    # Per-generation scoped-VMEM limit: raise it past the (low) defaults when
    # the working set warrants it, but never past the per-chip safe cap
    # (~48 MiB on v7x's 64 MiB physical VMEM, ~96 MiB on v5e/v6e's 128 MiB).
    vmem_limit = int(min(max(int(1.25 * est), 32 * 1024 * 1024), vmem_cap))

    out = pl.pallas_call(
        kernel,
        out_shape=jax.ShapeDtypeStruct((BH, Sq, D), Q.dtype),
        grid_spec=pltpu.PrefetchScalarGridSpec(
            num_scalar_prefetch=0,
            grid=grid,
            in_specs=in_specs,
            out_specs=out_spec,
            scratch_shapes=scratch_shapes),
        compiler_params=pltpu.CompilerParams(
            dimension_semantics=("parallel", "parallel", "arbitrary"),
            vmem_limit_bytes=vmem_limit),
        interpret=interpret,
    )(*operands)

    return out.reshape(B, H, Sq, D)


def _reference(Q, K, V, padding_mask, scale):
    scores = jnp.einsum("bhqd,bhkd->bhqk", Q, K) * scale
    if padding_mask is not None:
        scores = jnp.where(padding_mask, -jnp.inf, scores)
    attn = jax.nn.softmax(scores, axis=-1)
    return jnp.einsum("bhqk,bhkd->bhqd", attn, V)


if __name__ == "__main__":
    key = jax.random.PRNGKey(0)
    key_a, key_b = jax.random.split(key)

    # --- Case 1: module-native small shapes (B=2, H=4, S=8, d_head=32), key-padding mask.
    B, H, S, D = 2, 4, 8, 32
    kq, kk, kv = jax.random.split(key_a, 3)
    Q = jax.random.normal(kq, (B, H, S, D), dtype=jnp.float32)
    K = jax.random.normal(kk, (B, H, S, D), dtype=jnp.float32)
    V = jax.random.normal(kv, (B, H, S, D), dtype=jnp.float32)
    pad = jnp.zeros((B, 1, 1, S), dtype=bool).at[1, :, :, -2:].set(True)
    ref = _reference(Q, K, V, pad, 1.0 / D ** 0.5)

    # Default path: bf16 MXU operands, f32 accumulation -> loose tolerance.
    out = jax.block_until_ready(
        scaled_dot_product_attention(Q, K, V, padding_mask=pad, d_head=D))
    assert out.shape == (B, H, S, D)
    assert jnp.allclose(out, ref, atol=3e-2, rtol=3e-2), "masked bf16 mismatch"

    # Exact f32 matmul path -> tight tolerance.
    out_f32 = jax.block_until_ready(scaled_dot_product_attention(
        Q, K, V, padding_mask=pad, d_head=D, matmul_dtype=jnp.float32))
    assert jnp.allclose(out_f32, ref, atol=1e-4, rtol=1e-4), "masked f32 mismatch"

    # --- Case 2: no mask -> mask-free kernel variant (no bias tensor DMA'd).
    ref_nm = _reference(Q, K, V, None, 1.0 / D ** 0.5)
    out_nm = jax.block_until_ready(scaled_dot_product_attention(Q, K, V, d_head=D))
    assert jnp.allclose(out_nm, ref_nm, atol=3e-2, rtol=3e-2), "mask-free mismatch"

    # --- Case 3: multi-tile online softmax (2x2 q/k tiles) -> K/V-resident path.
    B2, H2, S2, D2 = 1, 2, 256, 64
    kq2, kk2, kv2 = jax.random.split(key_b, 3)
    Q2 = jax.random.normal(kq2, (B2, H2, S2, D2), dtype=jnp.float32)
    K2 = jax.random.normal(kk2, (B2, H2, S2, D2), dtype=jnp.float32)
    V2 = jax.random.normal(kv2, (B2, H2, S2, D2), dtype=jnp.float32)
    pad2 = jnp.zeros((B2, 1, 1, S2), dtype=bool).at[:, :, :, -40:].set(True)
    ref2 = _reference(Q2, K2, V2, pad2, 1.0 / D2 ** 0.5)

    # Resident K/V, exact f32 matmuls -> tight tolerance.
    out2_f32 = jax.block_until_ready(scaled_dot_product_attention(
        Q2, K2, V2, padding_mask=pad2, d_head=D2, tq=128, tk=128,
        matmul_dtype=jnp.float32))
    assert jnp.allclose(out2_f32, ref2, atol=1e-4, rtol=1e-4), "tiled f32 mismatch"

    # Resident K/V, default bf16 matmuls -> loose tolerance.
    out2_bf16 = jax.block_until_ready(scaled_dot_product_attention(
        Q2, K2, V2, padding_mask=pad2, d_head=D2, tq=128, tk=128))
    assert jnp.allclose(out2_bf16, ref2, atol=1e-1, rtol=1e-1), "bf16 matmul mismatch"

    # Auto tile selection (single k tile -> streamed path) as a smoke test.
    out2_auto = jax.block_until_ready(scaled_dot_product_attention(
        Q2, K2, V2, padding_mask=pad2, d_head=D2))
    assert jnp.allclose(out2_auto, ref2, atol=1e-1, rtol=1e-1), "auto-tile mismatch"

    print("KERNEL_OK")
</pallas_src>

<mosaic_0001>
module attributes {stable_mosaic.version = 11 : i64} {
  func.func @_flash_sdpa_kernel(%arg0: i32, %arg1: i32, %arg2: i32, %arg3: memref<4x8x32xf32, #tpu.memory_space<vmem>>, %arg4: memref<4x8x32xf32, #tpu.memory_space<vmem>>, %arg5: memref<4x8x32xf32, #tpu.memory_space<vmem>>, %arg6: memref<4x1x8xf32, #tpu.memory_space<vmem>>, %arg7: memref<4x8x32xf32, #tpu.memory_space<vmem>>, %arg8: memref<4x8x32xbf16, #tpu.memory_space<vmem>>, %arg9: memref<4x8x1xf32, #tpu.memory_space<vmem>>, %arg10: memref<4x8x1xf32, #tpu.memory_space<vmem>>, %arg11: memref<4x8x32xf32, #tpu.memory_space<vmem>>) attributes {dimension_semantics = [#tpu.dimension_semantics<parallel>, #tpu.dimension_semantics<parallel>, #tpu.dimension_semantics<arbitrary>], iteration_bounds = array<i64: 2, 1, 1>, scalar_prefetch = 0 : i64, scratch_operands = 4 : i64, tpu.core_type = #tpu.core_type<tc>, window_params = [{transform_indices = @transform_0, window_bounds = array<i64: 4, 8, 32>}, {transform_indices = @transform_1, window_bounds = array<i64: 4, 8, 32>}, {transform_indices = @transform_2, window_bounds = array<i64: 4, 8, 32>}, {transform_indices = @transform_3, window_bounds = array<i64: 4, 1, 8>}, {transform_indices = @transform_4, window_bounds = array<i64: 4, 8, 32>}]} {
    %c0_i32 = arith.constant 0 : i32
    %0 = arith.cmpi eq, %arg2, %c0_i32 : i32
    %1 = arith.extui %0 : i1 to i32
    %c0_i32_0 = arith.constant 0 : i32
    %2 = arith.cmpi ne, %1, %c0_i32_0 : i32
    scf.if %2 {
      %cst_35 = arith.constant -2.38197633E+38 : f32
      %38 = vector.broadcast %cst_35 : f32 to vector<4x8x1xf32>
      %c0_36 = arith.constant 0 : index
      %c0_37 = arith.constant 0 : index
      %c0_38 = arith.constant 0 : index
      %39 = vector.load %arg9[%c0_36, %c0_37, %c0_38] : memref<4x8x1xf32, #tpu.memory_space<vmem>>, vector<4x8x1xf32>
      tpu.vector_store %arg9[%c0_36, %c0_37, %c0_38], %38 {strides = array<i32>} : memref<4x8x1xf32, #tpu.memory_space<vmem>>, vector<4x8x1xf32>,
      %cst_39 = arith.constant 0.000000e+00 : f32
      %40 = vector.broadcast %cst_39 : f32 to vector<4x8x1xf32>
      %c0_40 = arith.constant 0 : index
      %c0_41 = arith.constant 0 : index
      %c0_42 = arith.constant 0 : index
      %41 = vector.load %arg10[%c0_40, %c0_41, %c0_42] : memref<4x8x1xf32, #tpu.memory_space<vmem>>, vector<4x8x1xf32>
      tpu.vector_store %arg10[%c0_40, %c0_41, %c0_42], %40 {strides = array<i32>} : memref<4x8x1xf32, #tpu.memory_space<vmem>>, vector<4x8x1xf32>,
      %cst_43 = arith.constant 0.000000e+00 : f32
      %42 = vector.broadcast %cst_43 : f32 to vector<4x8x32xf32>
      %c0_44 = arith.constant 0 : index
      %c0_45 = arith.constant 0 : index
      %c0_46 = arith.constant 0 : index
      %43 = vector.load %arg11[%c0_44, %c0_45, %c0_46] : memref<4x8x32xf32, #tpu.memory_space<vmem>>, vector<4x8x32xf32>
      tpu.vector_store %arg11[%c0_44, %c0_45, %c0_46], %42 {strides = array<i32>} : memref<4x8x32xf32, #tpu.memory_space<vmem>>, vector<4x8x32xf32>,
      %c0_47 = arith.constant 0 : index
      %c0_48 = arith.constant 0 : index
      %c0_49 = arith.constant 0 : index
      %44 = vector.load %arg3[%c0_47, %c0_48, %c0_49] : memref<4x8x32xf32, #tpu.memory_space<vmem>>, vector<4x8x32xf32>
      %cst_50 = arith.constant 0.176776692 : f32
      %45 = vector.broadcast %cst_50 : f32 to vector<4x8x32xf32>
      %46 = arith.mulf %44, %45 : vector<4x8x32xf32>
      %47 = arith.truncf %46 : vector<4x8x32xf32> to vector<4x8x32xbf16>
      %c0_51 = arith.constant 0 : index
      %c0_52 = arith.constant 0 : index
      %c0_53 = arith.constant 0 : index
      %48 = vector.load %arg8[%c0_51, %c0_52, %c0_53] : memref<4x8x32xbf16, #tpu.memory_space<vmem>>, vector<4x8x32xbf16>
      tpu.vector_store %arg8[%c0_51, %c0_52, %c0_53], %47 {strides = array<i32>} : memref<4x8x32xbf16, #tpu.memory_space<vmem>>, vector<4x8x32xbf16>,
    } else {
    }
    %c0 = arith.constant 0 : index
    %c0_1 = arith.constant 0 : index
    %c0_2 = arith.constant 0 : index
    %3 = vector.load %arg8[%c0, %c0_1, %c0_2] : memref<4x8x32xbf16, #tpu.memory_space<vmem>>, vector<4x8x32xbf16>
    %c0_3 = arith.constant 0 : index
    %c0_4 = arith.constant 0 : index
    %c0_5 = arith.constant 0 : index
    %4 = vector.load %arg4[%c0_3, %c0_4, %c0_5] : memref<4x8x32xf32, #tpu.memory_space<vmem>>, vector<4x8x32xf32>
    %c0_6 = arith.constant 0 : index
    %c0_7 = arith.constant 0 : index
    %c0_8 = arith.constant 0 : index
    %5 = vector.load %arg5[%c0_6, %c0_7, %c0_8] : memref<4x8x32xf32, #tpu.memory_space<vmem>>, vector<4x8x32xf32>
    %6 = arith.truncf %4 : vector<4x8x32xf32> to vector<4x8x32xbf16>
    %7 = arith.truncf %5 : vector<4x8x32xf32> to vector<4x8x32xbf16>
    %cst = arith.constant dense<0.000000e+00> : vector<4x8x8xf32>
    %8 = tpu.matmul %3, %6, %cst {dimension_numbers = #tpu.dot_dimension_numbers<[2], [2], [1], [1], [0, 0, 0, 1, 1, 1], [0], [0]>} : vector<4x8x32xbf16>, vector<4x8x32xbf16>, vector<4x8x8xf32> -> vector<4x8x8xf32>
    %c0_9 = arith.constant 0 : index
    %c0_10 = arith.constant 0 : index
    %c0_11 = arith.constant 0 : index
    %9 = vector.load %arg6[%c0_9, %c0_10, %c0_11] : memref<4x1x8xf32, #tpu.memory_space<vmem>>, vector<4x1x8xf32>
    %10 = vector.broadcast %9 : vector<4x1x8xf32> to vector<4x8x8xf32>
    %11 = arith.addf %8, %10 : vector<4x8x8xf32>
    %c0_12 = arith.constant 0 : index
    %c0_13 = arith.constant 0 : index
    %c0_14 = arith.constant 0 : index
    %12 = vector.load %arg9[%c0_12, %c0_13, %c0_14] : memref<4x8x1xf32, #tpu.memory_space<vmem>>, vector<4x8x1xf32>
    %cst_15 = arith.constant dense<0xFF800000> : vector<4x8xf32>
    %13 = vector.multi_reduction <maximumf>, %11, %cst_15 [2] : vector<4x8x8xf32> to vector<4x8xf32>
    %14 = vector.shape_cast %13 : vector<4x8xf32> to vector<4x8x1xf32>
    %15 = arith.maximumf %12, %14 : vector<4x8x1xf32>
    %16 = arith.subf %12, %15 : vector<4x8x1xf32>
    %17 = math.exp %16 : vector<4x8x1xf32>
    %18 = vector.broadcast %15 : vector<4x8x1xf32> to vector<4x8x8xf32>
    %19 = arith.subf %11, %18 : vector<4x8x8xf32>
    %20 = math.exp %19 : vector<4x8x8xf32>
    %c0_16 = arith.constant 0 : index
    %c0_17 = arith.constant 0 : index
    %c0_18 = arith.constant 0 : index
    %21 = vector.load %arg10[%c0_16, %c0_17, %c0_18] : memref<4x8x1xf32, #tpu.memory_space<vmem>>, vector<4x8x1xf32>
    %22 = arith.mulf %17, %21 : vector<4x8x1xf32>
    %cst_19 = arith.constant dense<0.000000e+00> : vector<4x8xf32>
    %23 = vector.multi_reduction <add>, %20, %cst_19 [2] : vector<4x8x8xf32> to vector<4x8xf32>
    %24 = vector.shape_cast %23 : vector<4x8xf32> to vector<4x8x1xf32>
    %25 = arith.addf %22, %24 : vector<4x8x1xf32>
    %c0_20 = arith.constant 0 : index
    %c0_21 = arith.constant 0 : index
    %c0_22 = arith.constant 0 : index
    %26 = vector.load %arg10[%c0_20, %c0_21, %c0_22] : memref<4x8x1xf32, #tpu.memory_space<vmem>>, vector<4x8x1xf32>
    tpu.vector_store %arg10[%c0_20, %c0_21, %c0_22], %25 {strides = array<i32>} : memref<4x8x1xf32, #tpu.memory_space<vmem>>, vector<4x8x1xf32>,
    %27 = arith.truncf %20 : vector<4x8x8xf32> to vector<4x8x8xbf16>
    %cst_23 = arith.constant dense<0.000000e+00> : vector<4x8x32xf32>
    %28 = tpu.matmul %27, %7, %cst_23 {dimension_numbers = #tpu.dot_dimension_numbers<[2], [1], [1], [2], [0, 0, 0, 1, 1, 2], [0], [0]>} : vector<4x8x8xbf16>, vector<4x8x32xbf16>, vector<4x8x32xf32> -> vector<4x8x32xf32>
    %c0_24 = arith.constant 0 : index
    %c0_25 = arith.constant 0 : index
    %c0_26 = arith.constant 0 : index
    %29 = vector.load %arg11[%c0_24, %c0_25, %c0_26] : memref<4x8x32xf32, #tpu.memory_space<vmem>>, vector<4x8x32xf32>
    %30 = vector.broadcast %17 : vector<4x8x1xf32> to vector<4x8x32xf32>
    %31 = arith.mulf %30, %29 : vector<4x8x32xf32>
    %32 = arith.addf %31, %28 : vector<4x8x32xf32>
    %c0_27 = arith.constant 0 : index
    %c0_28 = arith.constant 0 : index
    %c0_29 = arith.constant 0 : index
    %33 = vector.load %arg11[%c0_27, %c0_28, %c0_29] : memref<4x8x32xf32, #tpu.memory_space<vmem>>, vector<4x8x32xf32>
    tpu.vector_store %arg11[%c0_27, %c0_28, %c0_29], %32 {strides = array<i32>} : memref<4x8x32xf32, #tpu.memory_space<vmem>>, vector<4x8x32xf32>,
    %c0_30 = arith.constant 0 : index
    %c0_31 = arith.constant 0 : index
    %c0_32 = arith.constant 0 : index
    %34 = vector.load %arg9[%c0_30, %c0_31, %c0_32] : memref<4x8x1xf32, #tpu.memory_space<vmem>>, vector<4x8x1xf32>
    tpu.vector_store %arg9[%c0_30, %c0_31, %c0_32], %15 {strides = array<i32>} : memref<4x8x1xf32, #tpu.memory_space<vmem>>, vector<4x8x1xf32>,
    %c0_i32_33 = arith.constant 0 : i32
    %35 = arith.cmpi eq, %arg2, %c0_i32_33 : i32
    %36 = arith.extui %35 : i1 to i32
    %c0_i32_34 = arith.constant 0 : i32
    %37 = arith.cmpi ne, %36, %c0_i32_34 : i32
    scf.if %37 {
      %c0_35 = arith.constant 0 : index
      %c0_36 = arith.constant 0 : index
      %c0_37 = arith.constant 0 : index
      %38 = vector.load %arg10[%c0_35, %c0_36, %c0_37] : memref<4x8x1xf32, #tpu.memory_space<vmem>>, vector<4x8x1xf32>
      %39 = tpu.reciprocal %38 : vector<4x8x1xf32> -> vector<4x8x1xf32>
      %c0_38 = arith.constant 0 : index
      %c0_39 = arith.constant 0 : index
      %c0_40 = arith.constant 0 : index
      %40 = vector.load %arg11[%c0_38, %c0_39, %c0_40] : memref<4x8x32xf32, #tpu.memory_space<vmem>>, vector<4x8x32xf32>
      %41 = vector.broadcast %39 : vector<4x8x1xf32> to vector<4x8x32xf32>
      %42 = arith.mulf %40, %41 : vector<4x8x32xf32>
      %c0_41 = arith.constant 0 : index
      %c0_42 = arith.constant 0 : index
      %c0_43 = arith.constant 0 : index
      %43 = vector.load %arg7[%c0_41, %c0_42, %c0_43] : memref<4x8x32xf32, #tpu.memory_space<vmem>>, vector<4x8x32xf32>
      tpu.vector_store %arg7[%c0_41, %c0_42, %c0_43], %42 {strides = array<i32>} : memref<4x8x32xf32, #tpu.memory_space<vmem>>, vector<4x8x32xf32>,
    } else {
    }
    return
  }
  func.func @transform_0(%arg0: i32, %arg1: i32, %arg2: i32) -> (i32, i32, i32) {
    %c0_i32 = arith.constant 0 : i32
    %c0_i32_0 = arith.constant 0 : i32
    return %arg0, %arg1, %c0_i32 : i32, i32, i32
  }
  func.func @transform_1(%arg0: i32, %arg1: i32, %arg2: i32) -> (i32, i32, i32) {
    %c0_i32 = arith.constant 0 : i32
    %c0_i32_0 = arith.constant 0 : i32
    return %arg0, %arg2, %c0_i32 : i32, i32, i32
  }
  func.func @transform_2(%arg0: i32, %arg1: i32, %arg2: i32) -> (i32, i32, i32) {
    %c0_i32 = arith.constant 0 : i32
    %c0_i32_0 = arith.constant 0 : i32
    return %arg0, %arg2, %c0_i32 : i32, i32, i32
  }
  func.func @transform_3(%arg0: i32, %arg1: i32, %arg2: i32) -> (i32, i32, i32) {
    %c0_i32 = arith.constant 0 : i32
    %c0_i32_0 = arith.constant 0 : i32
    return %arg0, %c0_i32, %arg2 : i32, i32, i32
  }
  func.func @transform_4(%arg0: i32, %arg1: i32, %arg2: i32) -> (i32, i32, i32) {
    %c0_i32 = arith.constant 0 : i32
    %c0_i32_0 = arith.constant 0 : i32
    return %arg0, %arg1, %c0_i32 : i32, i32, i32
  }
}

</mosaic_0001>

<llo_original>
// kernel: tpu_custom_call.1
$region0: #{tpu_custom_call.1}
  #allocation0 [shape = 'u32[]', space=smem, size = 0x4, offset = 0x4, fixed_abs, tag = 'smem constant byte address 0x4 - core index']
  #allocation1 [shape = 'u32[144,128]{1,0:T(1,128)}', space=vmem, size = 0x12000, scoped, tag = 'internal scratch']
  #allocation2 [shape = 'bf16[4,8,32]{2,1,0:T(8,128)(2,1)}', space=vmem, size = 0x2000, scoped, tag = 'scratch operand']
  #allocation3 [shape = 'f32[4,8,1]{2,1,0:T(8,128)}', space=vmem, size = 0x4000, scoped, tag = 'scratch operand']
  #allocation4 [shape = 'f32[4,8,1]{2,1,0:T(8,128)}', space=vmem, size = 0x4000, scoped, tag = 'scratch operand']
  #allocation5 [shape = 'f32[4,8,32]{2,1,0:T(8,128)}', space=vmem, size = 0x4000, scoped, tag = 'scratch operand']
  %s0 = inlined_call_operand.hbm [shape: f32[8,8,32], index: 0, kind: input, shape index: {}]
  %s1 = inlined_call_operand.hbm [shape: f32[8,8,32], index: 1, kind: input, shape index: {}]
  %s2 = inlined_call_operand.hbm [shape: f32[8,8,32], index: 2, kind: input, shape index: {}]
  %s3 = inlined_call_operand.vmem [shape: f32[8,1,8], index: 3, kind: input, shape index: {}]
  %s4 = inlined_call_operand.hbm [shape: f32[8,8,32], index: 4, kind: output, shape index: {}]
  %s5 = sld [smem:[#allocation0]]
  $region69: #{tpu_custom_call.1} parent=0
    _
  %s7 = ssub.s32 1, %s5
  %s8 = scalar_select 0, %s7, %s5
  $region1: #{tpu_custom_call.1} parent=0
    #allocation6 [shape = 'u8[32768]{0}', space=vmem, size = 0x8000, scoped, tag = 'input window, operand 0']
    #allocation7 [shape = 's32[2]{0}', space=sflag, size = 0x8, scoped, tag = 'scoped memory for tpu_custom_call.1']
    #allocation8 [shape = 's32[2]{0}', space=sflag, size = 0x8, scoped, tag = 'scoped memory for tpu_custom_call.1']
    #allocation9 [shape = 'u8[32768]{0}', space=vmem, size = 0x8000, scoped, tag = 'input window, operand 1']
    #allocation10 [shape = 's32[2]{0}', space=sflag, size = 0x8, scoped, tag = 'scoped memory for tpu_custom_call.1']
    #allocation11 [shape = 'u8[32768]{0}', space=vmem, size = 0x8000, scoped, tag = 'input window, operand 2']
    #allocation12 [shape = 'u8[32768]{0}', space=vmem, size = 0x8000, scoped, tag = 'output window, operand 0']
    %9 = vsyncpa [#allocation7], 0
    %s10 = scalar_lea.sflag [#allocation7], 1
    %11 = vsyncpa %s10, 0
    %12 = vsyncpa [#allocation10], 0
    %s13 = scalar_lea.sflag [#allocation10], 1
    %14 = vsyncpa %s13, 0
    %15 = vsyncpa [#allocation8], 0
    %s16 = scalar_lea.sflag [#allocation8], 1
    %17 = vsyncpa %s16, 0
    loop: start=0, step=1, limit=4
    $region2: #{tpu_custom_call.1} parent=1 // loop_pre_header
      _
    $region3: #{tpu_custom_call.1} parent=1 // loop_header
      %s19 = sphi 0, %s23
      %p20 = scmp.ge.s32.totalorder %s19, 4
      %s26 = sphi 0, %s45
      %s27 = sphi 0, %s41
      %s28 = sphi 0, %s37
      %s29 = sphi 0, %s26
      %s30 = sphi 0, %s27
      %s31 = sphi 0, %s28
      %s32 = sphi 0, %s29
      %s33 = sphi 0, %s30
      %s34 = sphi 0, %s31
      %s50 = sphi 0, %s52
      %s53 = sphi 0, %s50
      %s54 = sphi 0, %s53
      %s70 = sphi 0, %s54
      %s78 = sphi 0, %s80
      %s81 = sphi 0, %s78
      %s82 = sphi 0, %s81
      %s98 = sphi 0, %s82
      %s106 = sphi 0, %s108
      %s109 = sphi 0, %s106
      %s110 = sphi 0, %s109
      %s126 = sphi 0, %s110
      %s134 = sphi 0, %s136
      %s137 = sphi 0, %s134
      %s138 = sphi 0, %s137
      %s154 = sphi 0, %s138
      %s162 = sphi 0, %s164
      %s165 = sphi 0, %s162
      %s166 = sphi 0, %s165
      %s182 = sphi 0, %s166
    $region4: #{tpu_custom_call.1} parent=1 // loop_header_branch
      %22 = sbr.rel (%p20) target = $region8
    $region5: #{tpu_custom_call.1} parent=1 // loop_body
      %s24 = ssub.s32 %s19, 1
      %s25 = ssub.s32 %s19, 2
      %s35 = sadd.s32 1, %s28
      %p36 = scmp.ge.s32.totalorder %s35, 1
      %s37 = scalar_select %p36, 0, %s35
      %s38 = sadd.s32 1, %s27
      %s39 = scalar_select %p36, %s38, %s27
      %p40 = scmp.ge.s32.totalorder %s39, 1
      %s41 = scalar_select %p40, 0, %s39
      %s42 = sadd.s32 1, %s26
      %s43 = scalar_select %p40, %s42, %s26
      %p44 = scmp.ge.s32.totalorder %s43, 2
      %s45 = scalar_select %p44, 0, %s43
      %s46 = ssub.s32 %s26, %s45
      %s47 = ssub.s32 %s27, %s41
      %s48 = sor.u32 %s46, %s47
      %p49 = scmp.eq.s32.totalorder %s48, 0
      %s51 = sadd.s32 %s50, 1
      %s52 = scalar_select %p49, %s50, %s51
      %p55 = pneg %p49
      %p56 = scmp.eq.s32.totalorder %s19, 1
      %p57 = por %p55, %p56
      %p58 = scmp.ne.s32.totalorder %s50, %s53
      %p59 = scmp.eq.s32.totalorder %s19, 0
      %p60 = por %p58, %p59
      %p61 = scmp.ne.s32.totalorder %s50, %s53
      %p62 = scmp.eq.s32.totalorder %s24, 1
      %p63 = por %p61, %p62
      %p64 = scmp.ne.s32.totalorder %s53, %s54
      %p65 = scmp.eq.s32.totalorder %s24, 0
      %p66 = por %p64, %p65
      %p67 = scmp.ne.s32.totalorder %s53, %s54
      %p68 = scmp.eq.s32.totalorder %s25, 1
      %p69 = por %p67, %p68
      %p71 = scmp.ne.s32.totalorder %s54, %s70
      %p72 = scmp.eq.s32.totalorder %s25, 0
      %p73 = por %p71, %p72
      %s74 = ssub.s32 %s26, %s45
      %s75 = ssub.s32 %s28, %s37
      %s76 = sor.u32 %s74, %s75
      %p77 = scmp.eq.s32.totalorder %s76, 0
      %s79 = sadd.s32 %s78, 1
      %s80 = scalar_select %p77, %s78, %s79
      %p83 = pneg %p77
      %p84 = scmp.eq.s32.totalorder %s19, 1
      %p85 = por %p83, %p84
      %p86 = scmp.ne.s32.totalorder %s78, %s81
      %p87 = scmp.eq.s32.totalorder %s19, 0
      %p88 = por %p86, %p87
      %p89 = scmp.ne.s32.totalorder %s78, %s81
      %p90 = scmp.eq.s32.totalorder %s24, 1
      %p91 = por %p89, %p90
      %p92 = scmp.ne.s32.totalorder %s81, %s82
      %p93 = scmp.eq.s32.totalorder %s24, 0
      %p94 = por %p92, %p93
      %p95 = scmp.ne.s32.totalorder %s81, %s82
      %p96 = scmp.eq.s32.totalorder %s25, 1
      %p97 = por %p95, %p96
      %p99 = scmp.ne.s32.totalorder %s82, %s98
      %p100 = scmp.eq.s32.totalorder %s25, 0
      %p101 = por %p99, %p100
      %s102 = ssub.s32 %s26, %s45
      %s103 = ssub.s32 %s28, %s37
      %s104 = sor.u32 %s102, %s103
      %p105 = scmp.eq.s32.totalorder %s104, 0
      %s107 = sadd.s32 %s106, 1
      %s108 = scalar_select %p105, %s106, %s107
      %p111 = pneg %p105
      %p112 = scmp.eq.s32.totalorder %s19, 1
      %p113 = por %p111, %p112
      %p114 = scmp.ne.s32.totalorder %s106, %s109
      %p115 = scmp.eq.s32.totalorder %s19, 0
      %p116 = por %p114, %p115
      %p117 = scmp.ne.s32.totalorder %s106, %s109
      %p118 = scmp.eq.s32.totalorder %s24, 1
      %p119 = por %p117, %p118
      %p120 = scmp.ne.s32.totalorder %s109, %s110
      %p121 = scmp.eq.s32.totalorder %s24, 0
      %p122 = por %p120, %p121
      %p123 = scmp.ne.s32.totalorder %s109, %s110
      %p124 = scmp.eq.s32.totalorder %s25, 1
      %p125 = por %p123, %p124
      %p127 = scmp.ne.s32.totalorder %s110, %s126
      %p128 = scmp.eq.s32.totalorder %s25, 0
      %p129 = por %p127, %p128
      %s130 = ssub.s32 %s26, %s45
      %s131 = ssub.s32 %s28, %s37
      %s132 = sor.u32 %s130, %s131
      %p133 = scmp.eq.s32.totalorder %s132, 0
      %s135 = sadd.s32 %s134, 1
      %s136 = scalar_select %p133, %s134, %s135
      %p139 = pneg %p133
      %p140 = scmp.eq.s32.totalorder %s19, 1
      %p141 = por %p139, %p140
      %p142 = scmp.ne.s32.totalorder %s134, %s137
      %p143 = scmp.eq.s32.totalorder %s19, 0
      %p144 = por %p142, %p143
      %p145 = scmp.ne.s32.totalorder %s134, %s137
      %p146 = scmp.eq.s32.totalorder %s24, 1
      %p147 = por %p145, %p146
      %p148 = scmp.ne.s32.totalorder %s137, %s138
      %p149 = scmp.eq.s32.totalorder %s24, 0
      %p150 = por %p148, %p149
      %p151 = scmp.ne.s32.totalorder %s137, %s138
      %p152 = scmp.eq.s32.totalorder %s25, 1
      %p153 = por %p151, %p152
      %p155 = scmp.ne.s32.totalorder %s138, %s154
      %p156 = scmp.eq.s32.totalorder %s25, 0
      %p157 = por %p155, %p156
      %s158 = ssub.s32 %s26, %s45
      %s159 = ssub.s32 %s27, %s41
      %s160 = sor.u32 %s158, %s159
      %p161 = scmp.eq.s32.totalorder %s160, 0
      %s163 = sadd.s32 %s162, 1
      %s164 = scalar_select %p161, %s162, %s163
      %p167 = pneg %p161
      %p168 = scmp.eq.s32.totalorder %s19, 1
      %p169 = por %p167, %p168
      %p170 = scmp.ne.s32.totalorder %s162, %s165
      %p171 = scmp.eq.s32.totalorder %s19, 0
      %p172 = por %p170, %p171
      %p173 = scmp.ne.s32.totalorder %s162, %s165
      %p174 = scmp.eq.s32.totalorder %s24, 1
      %p175 = por %p173, %p174
      %p176 = scmp.ne.s32.totalorder %s165, %s166
      %p177 = scmp.eq.s32.totalorder %s24, 0
      %p178 = por %p176, %p177
      %p179 = scmp.ne.s32.totalorder %s165, %s166
      %p180 = scmp.eq.s32.totalorder %s25, 1
      %p181 = por %p179, %p180
      %p183 = scmp.ne.s32.totalorder %s166, %s182
      %p184 = scmp.eq.s32.totalorder %s25, 0
      %p185 = por %p183, %p184
      %p186 = scmp.le.s32.totalorder 1, %s19
      %p187 = scmp.lt.s32.totalorder %s19, 3
      %p188 = pnand %p186, %p187
      %p189 = pneg %p188
      // Predicated region
      $region9: #{tpu_custom_call.1} parent=5 // pred_check
        _
      $region10: #{tpu_custom_call.1} parent=5 // pred_check_branch
        %191 = sbr.rel (%p188) target = $region12
      $region11: #{tpu_custom_call.1} parent=5 // pred_region
        %s192 = ssub.s32 %s19, 1
      $region12: #{tpu_custom_call.1} parent=5 // pred_fallthru
        _
      %p193 = scmp.lt.s32.totalorder %s19, 2
      // Predicated region
      $region13: #{tpu_custom_call.1} parent=5 // pred_check
        %p194 = pneg %p193
      $region14: #{tpu_custom_call.1} parent=5 // pred_check_branch
        %196 = sbr.rel (%p194) target = $region16
      $region15: #{tpu_custom_call.1} parent=5 // pred_region
        // Predicated region
        $region17: #{tpu_custom_call.1} parent=15 // pred_check
          %p197 = pneg %p60
        $region18: #{tpu_custom_call.1} parent=15 // pred_check_branch
          %199 = sbr.rel (%p197) target = $region20
        $region19: #{tpu_custom_call.1} parent=15 // pred_region
          %s200 = sand.u32 %s50, 1
          %s201 = scalar_lea.sflag [#allocation7], %s200
          %s202 = sand.u32 %s50, 1
          %s203 = smul.addr %s202, 32
          %s204 = scalar_lea.vmem [#allocation6], %s203
          %s205 = smul.u32 4, %s26
          %s207 = ssub.s32 512, 512
          %208 = vsyncadd %s201, %s207
          %s209 = sadd.s32 %s27, %s205
          %s210 = smul.addr %s209, 128
          %s211 = scalar_lea.hbm %s0, %s210
          %s212 = sshll.u32 %s204, 4
          %s213 = int_to_ptr.vmem [resolvable:$true] %s212
          %218 = dma.hbm_to_vmem [thread:$0]  %s211, 512, %s213, %s201, 128, 128, 8
        $region20: #{tpu_custom_call.1} parent=15 // pred_fallthru
          _
        // Predicated region
        $region21: #{tpu_custom_call.1} parent=15 // pred_check
          %p219 = pneg %p88
        $region22: #{tpu_custom_call.1} parent=15 // pred_check_branch
          %221 = sbr.rel (%p219) target = $region24
        $region23: #{tpu_custom_call.1} parent=15 // pred_region
          %s222 = sand.u32 %s19, 1
          %s223 = scalar_lea.sflag [#allocation10], %s222
          %s224 = sand.u32 %s78, 1
          %s225 = smul.addr %s224, 32
          %s226 = scalar_lea.vmem [#allocation9], %s225
          %s227 = smul.u32 4, %s26
          %s229 = ssub.s32 512, 512
          %230 = vsyncadd %s223, %s229
          %s231 = sadd.s32 %s28, %s227
          %s232 = smul.addr %s231, 128
          %s233 = scalar_lea.hbm %s1, %s232
          %s234 = sshll.u32 %s226, 4
          %s235 = int_to_ptr.vmem [resolvable:$true] %s234
          %240 = dma.hbm_to_vmem [thread:$0]  %s233, 512, %s235, %s223, 128, 128, 8
        $region24: #{tpu_custom_call.1} parent=15 // pred_fallthru
          _
        // Predicated region
        $region25: #{tpu_custom_call.1} parent=15 // pred_check
          %p241 = pneg %p116
        $region26: #{tpu_custom_call.1} parent=15 // pred_check_branch
          %243 = sbr.rel (%p241) target = $region28
        $region27: #{tpu_custom_call.1} parent=15 // pred_region
          %s244 = sand.u32 %s19, 1
          %s245 = scalar_lea.sflag [#allocation10], %s244
          %s246 = sand.u32 %s106, 1
          %s247 = smul.addr %s246, 32
          %s248 = scalar_lea.vmem [#allocation11], %s247
          %s249 = smul.u32 4, %s26
          %s251 = ssub.s32 512, 512
          %252 = vsyncadd %s245, %s251
          %s253 = sadd.s32 %s28, %s249
          %s254 = smul.addr %s253, 128
          %s255 = scalar_lea.hbm %s2, %s254
          %s256 = sshll.u32 %s248, 4
          %s257 = int_to_ptr.vmem [resolvable:$true] %s256
          %262 = dma.hbm_to_vmem [thread:$0]  %s255, 512, %s257, %s245, 128, 128, 8
        $region28: #{tpu_custom_call.1} parent=15 // pred_fallthru
          _
        // Predicated region
        $region29: #{tpu_custom_call.1} parent=15 // pred_check
          %p263 = pneg %p144
        $region30: #{tpu_custom_call.1} parent=15 // pred_check_branch
          %265 = sbr.rel (%p263) target = $region32
        $region31: #{tpu_custom_call.1} parent=15 // pred_region
          %s266 = smul.u32 4, %s26
          %p267 = scmp.lt.s32.totalorder %s266, 7
          %s268 = scalar_select %p267, %s266, 7
          %p269 = scmp.lt.s32.totalorder %s28, 0
          %s270 = scalar_select %p269, %s28, 0
          %s271 = sadd.s32 %s270, %s268
          %s272 = scalar_lea.vmem %s3, %s271
          %s273 = smul.u32 4, %s26
        $region32: #{tpu_custom_call.1} parent=15 // pred_fallthru
          _
      $region16: #{tpu_custom_call.1} parent=5 // pred_fallthru
        _
      %p274 = scmp.le.s32.totalorder 1, %s19
      %p275 = scmp.lt.s32.totalorder %s19, 3
      %p276 = pnand %p274, %p275
      %p277 = pneg %p276
      // Predicated region
      $region33: #{tpu_custom_call.1} parent=5 // pred_check
        _
      $region34: #{tpu_custom_call.1} parent=5 // pred_check_branch
        %279 = sbr.rel (%p276) target = $region36
      $region35: #{tpu_custom_call.1} parent=5 // pred_region
        %s280 = ssub.s32 %s19, 1
        %s281 = sand.u32 %s53, 1
        %s282 = scalar_lea.sflag [#allocation7], %s281
        %s283 = sand.u32 %s53, 1
        %s284 = smul.addr %s283, 32
        %s285 = scalar_lea.vmem [#allocation6], %s284
        // Predicated region
        $region37: #{tpu_custom_call.1} parent=35 // pred_check
          %p286 = pneg %p66
        $region38: #{tpu_custom_call.1} parent=35 // pred_check_branch
          %288 = sbr.rel (%p286) target = $region40
        $region39: #{tpu_custom_call.1} parent=35 // pred_region
          %289 = dma.done %s282, 512
        $region40: #{tpu_custom_call.1} parent=35 // pred_fallthru
          _
        %s290 = sand.u32 %s24, 1
        %s291 = scalar_lea.sflag [#allocation10], %s290
        %s292 = sand.u32 %s81, 1
        %s293 = smul.addr %s292, 32
        %s294 = scalar_lea.vmem [#allocation9], %s293
        // Predicated region
        $region41: #{tpu_custom_call.1} parent=35 // pred_check
          %p295 = pneg %p94
        $region42: #{tpu_custom_call.1} parent=35 // pred_check_branch
          %297 = sbr.rel (%p295) target = $region44
        $region43: #{tpu_custom_call.1} parent=35 // pred_region
          %298 = dma.done %s291, 512
        $region44: #{tpu_custom_call.1} parent=35 // pred_fallthru
          _
        %s299 = sand.u32 %s24, 1
        %s300 = scalar_lea.sflag [#allocation10], %s299
        %s301 = sand.u32 %s109, 1
        %s302 = smul.addr %s301, 32
        %s303 = scalar_lea.vmem [#allocation11], %s302
        // Predicated region
        $region45: #{tpu_custom_call.1} parent=35 // pred_check
          %p304 = pneg %p122
        $region46: #{tpu_custom_call.1} parent=35 // pred_check_branch
          %306 = sbr.rel (%p304) target = $region48
        $region47: #{tpu_custom_call.1} parent=35 // pred_region
          %307 = dma.done %s300, 512
        $region48: #{tpu_custom_call.1} parent=35 // pred_fallthru
          _
        %s308 = sand.u32 %s53, 1
        %s309 = scalar_lea.sflag [#allocation7], %s308
        %s310 = sand.u32 %s53, 1
        %s311 = smul.addr %s310, 32
        %s312 = scalar_lea.vmem [#allocation6], %s311
        %p313 = pneg %p66
        %p314 = pneg %p63
        %s315 = sand.u32 %s24, 1
        %s316 = scalar_lea.sflag [#allocation10], %s315
        %s317 = sand.u32 %s81, 1
        %s318 = smul.addr %s317, 32
        %s319 = scalar_lea.vmem [#allocation9], %s318
        %p320 = pneg %p94
        %p321 = pneg %p91
        %s322 = sand.u32 %s24, 1
        %s323 = scalar_lea.sflag [#allocation10], %s322
        %s324 = sand.u32 %s109, 1
        %s325 = smul.addr %s324, 32
        %s326 = scalar_lea.vmem [#allocation11], %s325
        %p327 = pneg %p122
        %p328 = pneg %p119
        %s329 = smul.u32 4, %s29
        %p330 = scmp.lt.s32.totalorder %s329, 7
        %s331 = scalar_select %p330, %s329, 7
        %p332 = scmp.lt.s32.totalorder %s31, 0
        %s333 = scalar_select %p332, %s31, 0
        %s334 = sadd.s32 %s333, %s331
        %s335 = scalar_lea.vmem %s3, %s334
        %p336 = pneg %p150
        %p337 = pneg %p147
        %p338 = pneg %p178
        %p339 = pneg %p175
        %s340 = sand.u32 %s165, 1
        %s341 = scalar_lea.sflag [#allocation8], %s340
        %s342 = sand.u32 %s165, 1
        %s343 = smul.addr %s342, 32
        %s344 = scalar_lea.vmem [#allocation12], %s343
        %s345 = smul.u32 4, %s29
        %s346 = smul.u32 4, %s29
        %s347 = smul.u32 4, %s29
        %s348 = smul.u32 4, %s29
        %p349 = scmp.lt.s32.totalorder %s348, 7
        %s350 = scalar_select %p349, %s348, 7
        %p351 = scmp.lt.s32.totalorder %s31, 0
        %s352 = scalar_select %p351, %s31, 0
        %s353 = sadd.s32 %s352, %s350
        %s354 = scalar_lea.vmem %s3, %s353
        %s355 = smul.u32 4, %s29
        %s356 = smul.u32 4, %s29
        %p358 = scmp.eq.s32.totalorder %s31, 0
        // Predicated region
        $region49: #{tpu_custom_call.1} parent=35 // pred_check
          %p359 = pneg %p358
        $region50: #{tpu_custom_call.1} parent=35 // pred_check_branch
          %361 = sbr.rel (%p359) target = $region52
        $region51: #{tpu_custom_call.1} parent=35 // pred_region
          %vm362 = vcmask 7168
          %363 = vst.msk [vmem:[#allocation3] sm:$0xff] %vm362, -2.3819763e+38
          %364 = vst.msk [vmem:[#allocation3 + $0x8] sm:$0xff] %vm362, -2.3819763e+38
          %365 = vst.msk [vmem:[#allocation3 + $0x10] sm:$0xff] %vm362, -2.3819763e+38
          %366 = vst.msk [vmem:[#allocation3 + $0x18] sm:$0xff] %vm362, -2.3819763e+38
          %367 = vst.msk [vmem:[#allocation4] sm:$0xff] %vm362, 0.0
          %368 = vst.msk [vmem:[#allocation4 + $0x8] sm:$0xff] %vm362, 0.0
          %369 = vst.msk [vmem:[#allocation4 + $0x10] sm:$0xff] %vm362, 0.0
          %370 = vst.msk [vmem:[#allocation4 + $0x18] sm:$0xff] %vm362, 0.0
          %vm371 = vcmask 261120
          %372 = vst.msk [vmem:[#allocation5] sm:$0xff] %vm371, 0.0
          %373 = vst.msk [vmem:[#allocation5 + $0x8] sm:$0xff] %vm371, 0.0
          %374 = vst.msk [vmem:[#allocation5 + $0x10] sm:$0xff] %vm371, 0.0
          %375 = vst.msk [vmem:[#allocation5 + $0x18] sm:$0xff] %vm371, 0.0
          %v376 = vld [vmem:[%s285] sm:$0xff]
          %v377 = vld [vmem:[%s285 + $0x8] sm:$0xff]
          %v378 = vld [vmem:[%s285 + $0x10] sm:$0xff]
          %v379 = vld [vmem:[%s285 + $0x18] sm:$0xff]
          %v380 = vmul.f32 %v376, 0.17677669
          %v381 = vmul.f32 %v377, 0.17677669
          %v382 = vmul.f32 %v378, 0.17677669
          %v383 = vmul.f32 %v379, 0.17677669
          %v384 = vpack.c.bf16 %v380, %v380
          %v385 = vpack.c.bf16 %v381, %v381
          %v386 = vpack.c.bf16 %v382, %v382
          %v387 = vpack.c.bf16 %v383, %v383
          %vm388 = vcmask 257024
          %389 = vst.msk [vmem:[#allocation2] sm:$0xf] %vm388, %v384
          %390 = vst.msk [vmem:[#allocation2 + $0x4] sm:$0xf] %vm388, %v385
          %391 = vst.msk [vmem:[#allocation2 + $0x8] sm:$0xf] %vm388, %v386
          %392 = vst.msk [vmem:[#allocation2 + $0xc] sm:$0xf] %vm388, %v387
        $region52: #{tpu_custom_call.1} parent=35 // pred_fallthru
          _
        %v393 = vld [vmem:[#allocation2] sm:$0xf]
        %v394 = vld [vmem:[#allocation2 + $0x4] sm:$0xf]
        %v395 = vld [vmem:[#allocation2 + $0x8] sm:$0xf]
        %v396 = vld [vmem:[#allocation2 + $0xc] sm:$0xf]
        %v397 = vld [vmem:[%s294] sm:$0xff]
        %v398 = vld [vmem:[%s294 + $0x8] sm:$0xff]
        %v399 = vld [vmem:[%s294 + $0x10] sm:$0xff]
        %v400 = vld [vmem:[%s294 + $0x18] sm:$0xff]
        %v401 = vld [vmem:[%s303] sm:$0xff]
        %v402 = vld [vmem:[%s303 + $0x8] sm:$0xff]
        %v403 = vld [vmem:[%s303 + $0x10] sm:$0xff]
        %v404 = vld [vmem:[%s303 + $0x18] sm:$0xff]
        %v405 = vpack.c.bf16 %v397, %v397
        %v406 = vpack.c.bf16 %v398, %v398
        %v407 = vpack.c.bf16 %v399, %v399
        %v408 = vpack.c.bf16 %v400, %v400
        %v409 = vpack.c.bf16 %v401, %v401
        %v410 = vpack.c.bf16 %v402, %v402
        %v411 = vpack.c.bf16 %v403, %v403
        %v412 = vpack.c.bf16 %v404, %v404
        %v413 = vld [vmem:[%s354] sm:$0x1]
        %v414 = vld [vmem:[%s354 + $0x1] sm:$0x1]
        %v415 = vld [vmem:[%s354 + $0x2] sm:$0x1]
        %v416 = vld [vmem:[%s354 + $0x3] sm:$0x1]
        %v421 = vlaneseq
        %v422 = vshrl.u32 %v421, 7
        %v423 = vsub.s32 0, %v422
        %v424 = vrot.slane %v413, %v423
        %v425 = vlaneseq
        %v426 = vshrl.u32 %v425, 7
        %v427 = vsub.s32 0, %v426
        %v428 = vrot.slane %v414, %v427
        %v429 = vlaneseq
        %v430 = vshrl.u32 %v429, 7
        %v431 = vsub.s32 0, %v430
        %v432 = vrot.slane %v415, %v431
        %v433 = vlaneseq
        %v434 = vshrl.u32 %v433, 7
        %v435 = vsub.s32 0, %v434
        %v436 = vrot.slane %v416, %v435
        %vm441 = vcmask 261120
        %v443 = vsel %vm441, %v393, 0
        %v446 = vsel %vm441, %v405, 0
        %448 = vmatprep.subr.bf16.mxu0 0
        %449 = vmatpush1.bf16.xpose.msra.mxu0 %v446
        %450 = vmatprep.subr.bf16.mxu0 0
        %451 = vmatpush1.bf16.xpose.msra.mxu0 0
        %452 = vmatprep.subr.bf16.mxu0 0
        %453 = vmatpush1.bf16.xpose.msra.mxu0 0
        %454 = vmatprep.subr.bf16.mxu0 0
        %455 = vmatpush1.bf16.xpose.msra.mxu0 0
        %456 = vmatprep.subr.bf16.mxu0 0
        %457 = vmatpush1.bf16.xpose.msra.mxu0 0
        %458 = vmatprep.subr.bf16.mxu0 0
        %459 = vmatpush1.bf16.xpose.msra.mxu0 0
        %460 = vmatprep.subr.bf16.mxu0 0
        %461 = vmatpush1.bf16.xpose.msra.mxu0 0
        %462 = vmatprep.subr.bf16.mxu0 0
        %463 = vmatpush1.bf16.xpose.msra.mxu0 0
        %464 = vmatprep.subr.bf16.mxu0 0
        %465 = vmatpush1.bf16.xpose.msra.mxu0 0
        %466 = vmatprep.subr.bf16.mxu0 0
        %467 = vmatpush1.bf16.xpose.msra.mxu0 0
        %468 = vmatprep.subr.bf16.mxu0 0
        %469 = vmatpush1.bf16.xpose.msra.mxu0 0
        %470 = vmatprep.subr.bf16.mxu0 0
        %471 = vmatpush1.bf16.xpose.msra.mxu0 0
        %472 = vmatprep.subr.bf16.mxu0 0
        %473 = vmatpush1.bf16.xpose.msra.mxu0 0
        %474 = vmatprep.subr.bf16.mxu0 0
        %475 = vmatpush1.bf16.xpose.msra.mxu0 0
        %476 = vmatprep.subr.bf16.mxu0 0
        %477 = vmatpush1.bf16.xpose.msra.mxu0 0
        %478 = vmatprep.subr.bf16.mxu0 0
        %479 = vmatpush1.bf16.xpose.msra.mxu0 0
        %480 = vmatprep.mubr.bf16.mxu0 0
        %481 = vmatmul.mubr.bf16.gmra.mrb[0].mxu0 %v443
        %v482 = vpop.f32.mrb[0].mxu0
        %v483 = vadd.f32 %v424, %v482
        %v484 = vpop.f32.mrb[0].mxu0
        %v485 = vpop.f32.mrb[0].mxu0
        %v486 = vpop.f32.mrb[0].mxu0
        %487 = vdwg.mxu0
        %v489 = vsel %vm441, %v394, 0
        %v492 = vsel %vm441, %v406, 0
        %494 = vmatprep.subr.bf16.mxu0 0
        %495 = vmatpush1.bf16.xpose.msra.mxu0 %v492
        %496 = vmatprep.subr.bf16.mxu0 0
        %497 = vmatpush1.bf16.xpose.msra.mxu0 0
        %498 = vmatprep.subr.bf16.mxu0 0
        %499 = vmatpush1.bf16.xpose.msra.mxu0 0
        %500 = vmatprep.subr.bf16.mxu0 0
        %501 = vmatpush1.bf16.xpose.msra.mxu0 0
        %502 = vmatprep.subr.bf16.mxu0 0
        %503 = vmatpush1.bf16.xpose.msra.mxu0 0
        %504 = vmatprep.subr.bf16.mxu0 0
        %505 = vmatpush1.bf16.xpose.msra.mxu0 0
        %506 = vmatprep.subr.bf16.mxu0 0
        %507 = vmatpush1.bf16.xpose.msra.mxu0 0
        %508 = vmatprep.subr.bf16.mxu0 0
        %509 = vmatpush1.bf16.xpose.msra.mxu0 0
        %510 = vmatprep.subr.bf16.mxu0 0
        %511 = vmatpush1.bf16.xpose.msra.mxu0 0
        %512 = vmatprep.subr.bf16.mxu0 0
        %513 = vmatpush1.bf16.xpose.msra.mxu0 0
        %514 = vmatprep.subr.bf16.mxu0 0
        %515 = vmatpush1.bf16.xpose.msra.mxu0 0
        %516 = vmatprep.subr.bf16.mxu0 0
        %517 = vmatpush1.bf16.xpose.msra.mxu0 0
        %518 = vmatprep.subr.bf16.mxu0 0
        %519 = vmatpush1.bf16.xpose.msra.mxu0 0
        %520 = vmatprep.subr.bf16.mxu0 0
        %521 = vmatpush1.bf16.xpose.msra.mxu0 0
        %522 = vmatprep.subr.bf16.mxu0 0
        %523 = vmatpush1.bf16.xpose.msra.mxu0 0
        %524 = vmatprep.subr.bf16.mxu0 0
        %525 = vmatpush1.bf16.xpose.msra.mxu0 0
        %526 = vmatprep.mubr.bf16.mxu0 0
        %527 = vmatmul.mubr.bf16.gmra.mrb[0].mxu0 %v489
        %v528 = vpop.f32.mrb[0].mxu0
        %v529 = vadd.f32 %v428, %v528
        %v530 = vpop.f32.mrb[0].mxu0
        %v531 = vpop.f32.mrb[0].mxu0
        %v532 = vpop.f32.mrb[0].mxu0
        %533 = vdwg.mxu0
        %v535 = vsel %vm441, %v395, 0
        %v538 = vsel %vm441, %v407, 0
        %540 = vmatprep.subr.bf16.mxu0 0
        %541 = vmatpush1.bf16.xpose.msra.mxu0 %v538
        %542 = vmatprep.subr.bf16.mxu0 0
        %543 = vmatpush1.bf16.xpose.msra.mxu0 0
        %544 = vmatprep.subr.bf16.mxu0 0
        %545 = vmatpush1.bf16.xpose.msra.mxu0 0
        %546 = vmatprep.subr.bf16.mxu0 0
        %547 = vmatpush1.bf16.xpose.msra.mxu0 0
        %548 = vmatprep.subr.bf16.mxu0 0
        %549 = vmatpush1.bf16.xpose.msra.mxu0 0
        %550 = vmatprep.subr.bf16.mxu0 0
        %551 = vmatpush1.bf16.xpose.msra.mxu0 0
        %552 = vmatprep.subr.bf16.mxu0 0
        %553 = vmatpush1.bf16.xpose.msra.mxu0 0
        %554 = vmatprep.subr.bf16.mxu0 0
        %555 = vmatpush1.bf16.xpose.msra.mxu0 0
        %556 = vmatprep.subr.bf16.mxu0 0
        %557 = vmatpush1.bf16.xpose.msra.mxu0 0
        %558 = vmatprep.subr.bf16.mxu0 0
        %559 = vmatpush1.bf16.xpose.msra.mxu0 0
        %560 = vmatprep.subr.bf16.mxu0 0
        %561 = vmatpush1.bf16.xpose.msra.mxu0 0
        %562 = vmatprep.subr.bf16.mxu0 0
        %563 = vmatpush1.bf16.xpose.msra.mxu0 0
        %564 = vmatprep.subr.bf16.mxu0 0
        %565 = vmatpush1.bf16.xpose.msra.mxu0 0
        %566 = vmatprep.subr.bf16.mxu0 0
        %567 = vmatpush1.bf16.xpose.msra.mxu0 0
        %568 = vmatprep.subr.bf16.mxu0 0
        %569 = vmatpush1.bf16.xpose.msra.mxu0 0
        %570 = vmatprep.subr.bf16.mxu0 0
        %571 = vmatpush1.bf16.xpose.msra.mxu0 0
        %572 = vmatprep.mubr.bf16.mxu0 0
        %573 = vmatmul.mubr.bf16.gmra.mrb[0].mxu0 %v535
        %v574 = vpop.f32.mrb[0].mxu0
        %v575 = vadd.f32 %v432, %v574
        %v576 = vpop.f32.mrb[0].mxu0
        %v577 = vpop.f32.mrb[0].mxu0
        %v578 = vpop.f32.mrb[0].mxu0
        %579 = vdwg.mxu0
        %v581 = vsel %vm441, %v396, 0
        %v584 = vsel %vm441, %v408, 0
        %586 = vmatprep.subr.bf16.mxu0 0
        %587 = vmatpush1.bf16.xpose.msra.mxu0 %v584
        %588 = vmatprep.subr.bf16.mxu0 0
        %589 = vmatpush1.bf16.xpose.msra.mxu0 0
        %590 = vmatprep.subr.bf16.mxu0 0
        %591 = vmatpush1.bf16.xpose.msra.mxu0 0
        %592 = vmatprep.subr.bf16.mxu0 0
        %593 = vmatpush1.bf16.xpose.msra.mxu0 0
        %594 = vmatprep.subr.bf16.mxu0 0
        %595 = vmatpush1.bf16.xpose.msra.mxu0 0
        %596 = vmatprep.subr.bf16.mxu0 0
        %597 = vmatpush1.bf16.xpose.msra.mxu0 0
        %598 = vmatprep.subr.bf16.mxu0 0
        %599 = vmatpush1.bf16.xpose.msra.mxu0 0
        %600 = vmatprep.subr.bf16.mxu0 0
        %601 = vmatpush1.bf16.xpose.msra.mxu0 0
        %602 = vmatprep.subr.bf16.mxu0 0
        %603 = vmatpush1.bf16.xpose.msra.mxu0 0
        %604 = vmatprep.subr.bf16.mxu0 0
        %605 = vmatpush1.bf16.xpose.msra.mxu0 0
        %606 = vmatprep.subr.bf16.mxu0 0
        %607 = vmatpush1.bf16.xpose.msra.mxu0 0
        %608 = vmatprep.subr.bf16.mxu0 0
        %609 = vmatpush1.bf16.xpose.msra.mxu0 0
        %610 = vmatprep.subr.bf16.mxu0 0
        %611 = vmatpush1.bf16.xpose.msra.mxu0 0
        %612 = vmatprep.subr.bf16.mxu0 0
        %613 = vmatpush1.bf16.xpose.msra.mxu0 0
        %614 = vmatprep.subr.bf16.mxu0 0
        %615 = vmatpush1.bf16.xpose.msra.mxu0 0
        %616 = vmatprep.subr.bf16.mxu0 0
        %617 = vmatpush1.bf16.xpose.msra.mxu0 0
        %618 = vmatprep.mubr.bf16.mxu0 0
        %619 = vmatmul.mubr.bf16.gmra.mrb[0].mxu0 %v581
        %v620 = vpop.f32.mrb[0].mxu0
        %v621 = vadd.f32 %v436, %v620
        %v622 = vpop.f32.mrb[0].mxu0
        %v623 = vpop.f32.mrb[0].mxu0
        %v624 = vpop.f32.mrb[0].mxu0
        %625 = vdwg.mxu0
        %v626 = vld [vmem:[#allocation3] sm:$0xff]
        %v627 = vld [vmem:[#allocation3 + $0x8] sm:$0xff]
        %v628 = vld [vmem:[#allocation3 + $0x10] sm:$0xff]
        %v629 = vld [vmem:[#allocation3 + $0x18] sm:$0xff]
        %vm630 = vcmask 64512
        %v631 = vsel %vm630, %v483, -inf
        %632 = vmax.xlane.f32.xlu0 %v631
        %v633 = vpop.xlane.xlu0 %632
        %v634 = vsel %vm630, %v529, -inf
        %635 = vmax.xlane.f32.xlu0 %v634
        %v636 = vpop.xlane.xlu0 %635
        %v637 = vsel %vm630, %v575, -inf
        %638 = vmax.xlane.f32.xlu0 %v637
        %v639 = vpop.xlane.xlu0 %638
        %v640 = vsel %vm630, %v621, -inf
        %641 = vmax.xlane.f32.xlu0 %v640
        %v642 = vpop.xlane.xlu0 %641
        %v643 = vmax.f32 %v626, %v633
        %v644 = vmax.f32 %v627, %v636
        %v645 = vmax.f32 %v628, %v639
        %v646 = vmax.f32 %v629, %v642
        %v647 = vsub.f32 %v626, %v643
        %v648 = vsub.f32 %v627, %v644
        %v649 = vsub.f32 %v628, %v645
        %v650 = vsub.f32 %v629, %v646
        %v651 = vmul.f32 %v647, 1.442695
        %v652 = vpow.pop %v651
        %v653 = vmul.f32 %v648, 1.442695
        %v654 = vpow.pop %v653
        %v655 = vmul.f32 %v649, 1.442695
        %v656 = vpow.pop %v655
        %v657 = vmul.f32 %v650, 1.442695
        %v658 = vpow.pop %v657
        %660 = vset.pattern.permute.xlu0 0
        %661 = vperm.xlu0 %660, %v643
        %v662 = vpop.permute.xlu0 %661
        %665 = vset.pattern.permute.xlu0 0
        %666 = vperm.xlu0 %665, %v644
        %v667 = vpop.permute.xlu0 %666
        %670 = vset.pattern.permute.xlu0 0
        %671 = vperm.xlu0 %670, %v645
        %v672 = vpop.permute.xlu0 %671
        %675 = vset.pattern.permute.xlu0 0
        %676 = vperm.xlu0 %675, %v646
        %v677 = vpop.permute.xlu0 %676
        %v679 = vsub.f32 %v483, %v662
        %v680 = vsub.f32 %v529, %v667
        %v681 = vsub.f32 %v575, %v672
        %v682 = vsub.f32 %v621, %v677
        %v683 = vmul.f32 %v679, 1.442695
        %v684 = vpow.pop %v683
        %v685 = vmul.f32 %v680, 1.442695
        %v686 = vpow.pop %v685
        %v687 = vmul.f32 %v681, 1.442695
        %v688 = vpow.pop %v687
        %v689 = vmul.f32 %v682, 1.442695
        %v690 = vpow.pop %v689
        %v691 = vld [vmem:[#allocation4] sm:$0xff]
        %v692 = vld [vmem:[#allocation4 + $0x8] sm:$0xff]
        %v693 = vld [vmem:[#allocation4 + $0x10] sm:$0xff]
        %v694 = vld [vmem:[#allocation4 + $0x18] sm:$0xff]
        %v695 = vmul.f32 %v652, %v691
        %v696 = vmul.f32 %v654, %v692
        %v697 = vmul.f32 %v656, %v693
        %v698 = vmul.f32 %v658, %v694
        %v699 = vsel %vm630, %v684, 0.0
        %700 = vadd.xlane.f32.xlu0 %v699
        %v701 = vpop.xlane.xlu0 %700
        %v702 = vsel %vm630, %v686, 0.0
        %703 = vadd.xlane.f32.xlu0 %v702
        %v704 = vpop.xlane.xlu0 %703
        %v705 = vsel %vm630, %v688, 0.0
        %706 = vadd.xlane.f32.xlu0 %v705
        %v707 = vpop.xlane.xlu0 %706
        %v708 = vsel %vm630, %v690, 0.0
        %709 = vadd.xlane.f32.xlu0 %v708
        %v710 = vpop.xlane.xlu0 %709
        %v711 = vadd.f32 %v695, %v701
        %v712 = vadd.f32 %v696, %v704
        %v713 = vadd.f32 %v697, %v707
        %v714 = vadd.f32 %v698, %v710
        %vm715 = vcmask 7168
        %716 = vst.msk [vmem:[#allocation4] sm:$0xff] %vm715, %v711
        %717 = vst.msk [vmem:[#allocation4 + $0x8] sm:$0xff] %vm715, %v712
        %718 = vst.msk [vmem:[#allocation4 + $0x10] sm:$0xff] %vm715, %v713
        %719 = vst.msk [vmem:[#allocation4 + $0x18] sm:$0xff] %vm715, %v714
        %v720 = vpack.c.bf16 %v684, %v684
        %v721 = vpack.c.bf16 %v686, %v686
        %v722 = vpack.c.bf16 %v688, %v688
        %v723 = vpack.c.bf16 %v690, %v690
        %v725 = vsel %vm630, %v720, 0
        %vm727 = vcmask 1043456
        %v729 = vsel %vm727, %v409, 0
        %731 = vmatprep.subr.bf16.mxu0 0
        %732 = vmatpush1.bf16.msra.mxu0 %v729
        %733 = vmatprep.subr.bf16.mxu0 0
        %734 = vmatpush1.bf16.msra.mxu0 0
        %735 = vmatprep.subr.bf16.mxu0 0
        %736 = vmatpush1.bf16.msra.mxu0 0
        %737 = vmatprep.subr.bf16.mxu0 0
        %738 = vmatpush1.bf16.msra.mxu0 0
        %739 = vmatprep.subr.bf16.mxu0 0
        %740 = vmatpush1.bf16.msra.mxu0 0
        %741 = vmatprep.subr.bf16.mxu0 0
        %742 = vmatpush1.bf16.msra.mxu0 0
        %743 = vmatprep.subr.bf16.mxu0 0
        %744 = vmatpush1.bf16.msra.mxu0 0
        %745 = vmatprep.subr.bf16.mxu0 0
        %746 = vmatpush1.bf16.msra.mxu0 0
        %747 = vmatprep.subr.bf16.mxu0 0
        %748 = vmatpush1.bf16.msra.mxu0 0
        %749 = vmatprep.subr.bf16.mxu0 0
        %750 = vmatpush1.bf16.msra.mxu0 0
        %751 = vmatprep.subr.bf16.mxu0 0
        %752 = vmatpush1.bf16.msra.mxu0 0
        %753 = vmatprep.subr.bf16.mxu0 0
        %754 = vmatpush1.bf16.msra.mxu0 0
        %755 = vmatprep.subr.bf16.mxu0 0
        %756 = vmatpush1.bf16.msra.mxu0 0
        %757 = vmatprep.subr.bf16.mxu0 0
        %758 = vmatpush1.bf16.msra.mxu0 0
        %759 = vmatprep.subr.bf16.mxu0 0
        %760 = vmatpush1.bf16.msra.mxu0 0
        %761 = vmatprep.subr.bf16.mxu0 0
        %762 = vmatpush1.bf16.msra.mxu0 0
        %763 = vmatprep.mubr.bf16.mxu0 0
        %764 = vmatmul.mubr.bf16.gmra.mrb[0].mxu0 %v725
        %v765 = vpop.f32.mrb[0].mxu0
        %v766 = vadd.f32 0.0, %v765
        %v767 = vpop.f32.mrb[0].mxu0
        %v768 = vpop.f32.mrb[0].mxu0
        %v769 = vpop.f32.mrb[0].mxu0
        %770 = vdwg.mxu0
        %v772 = vsel %vm630, %v721, 0
        %v775 = vsel %vm727, %v410, 0
        %777 = vmatprep.subr.bf16.mxu0 0
        %778 = vmatpush1.bf16.msra.mxu0 %v775
        %779 = vmatprep.subr.bf16.mxu0 0
        %780 = vmatpush1.bf16.msra.mxu0 0
        %781 = vmatprep.subr.bf16.mxu0 0
        %782 = vmatpush1.bf16.msra.mxu0 0
        %783 = vmatprep.subr.bf16.mxu0 0
        %784 = vmatpush1.bf16.msra.mxu0 0
        %785 = vmatprep.subr.bf16.mxu0 0
        %786 = vmatpush1.bf16.msra.mxu0 0
        %787 = vmatprep.subr.bf16.mxu0 0
        %788 = vmatpush1.bf16.msra.mxu0 0
        %789 = vmatprep.subr.bf16.mxu0 0
        %790 = vmatpush1.bf16.msra.mxu0 0
        %791 = vmatprep.subr.bf16.mxu0 0
        %792 = vmatpush1.bf16.msra.mxu0 0
        %793 = vmatprep.subr.bf16.mxu0 0
        %794 = vmatpush1.bf16.msra.mxu0 0
        %795 = vmatprep.subr.bf16.mxu0 0
        %796 = vmatpush1.bf16.msra.mxu0 0
        %797 = vmatprep.subr.bf16.mxu0 0
        %798 = vmatpush1.bf16.msra.mxu0 0
        %799 = vmatprep.subr.bf16.mxu0 0
        %800 = vmatpush1.bf16.msra.mxu0 0
        %801 = vmatprep.subr.bf16.mxu0 0
        %802 = vmatpush1.bf16.msra.mxu0 0
        %803 = vmatprep.subr.bf16.mxu0 0
        %804 = vmatpush1.bf16.msra.mxu0 0
        %805 = vmatprep.subr.bf16.mxu0 0
        %806 = vmatpush1.bf16.msra.mxu0 0
        %807 = vmatprep.subr.bf16.mxu0 0
        %808 = vmatpush1.bf16.msra.mxu0 0
        %809 = vmatprep.mubr.bf16.mxu0 0
        %810 = vmatmul.mubr.bf16.gmra.mrb[0].mxu0 %v772
        %v811 = vpop.f32.mrb[0].mxu0
        %v812 = vadd.f32 0.0, %v811
        %v813 = vpop.f32.mrb[0].mxu0
        %v814 = vpop.f32.mrb[0].mxu0
        %v815 = vpop.f32.mrb[0].mxu0
        %816 = vdwg.mxu0
        %v818 = vsel %vm630, %v722, 0
        %v821 = vsel %vm727, %v411, 0
        %823 = vmatprep.subr.bf16.mxu0 0
        %824 = vmatpush1.bf16.msra.mxu0 %v821
        %825 = vmatprep.subr.bf16.mxu0 0
        %826 = vmatpush1.bf16.msra.mxu0 0
        %827 = vmatprep.subr.bf16.mxu0 0
        %828 = vmatpush1.bf16.msra.mxu0 0
        %829 = vmatprep.subr.bf16.mxu0 0
        %830 = vmatpush1.bf16.msra.mxu0 0
        %831 = vmatprep.subr.bf16.mxu0 0
        %832 = vmatpush1.bf16.msra.mxu0 0
        %833 = vmatprep.subr.bf16.mxu0 0
        %834 = vmatpush1.bf16.msra.mxu0 0
        %835 = vmatprep.subr.bf16.mxu0 0
        %836 = vmatpush1.bf16.msra.mxu0 0
        %837 = vmatprep.subr.bf16.mxu0 0
        %838 = vmatpush1.bf16.msra.mxu0 0
        %839 = vmatprep.subr.bf16.mxu0 0
        %840 = vmatpush1.bf16.msra.mxu0 0
        %841 = vmatprep.subr.bf16.mxu0 0
        %842 = vmatpush1.bf16.msra.mxu0 0
        %843 = vmatprep.subr.bf16.mxu0 0
        %844 = vmatpush1.bf16.msra.mxu0 0
        %845 = vmatprep.subr.bf16.mxu0 0
        %846 = vmatpush1.bf16.msra.mxu0 0
        %847 = vmatprep.subr.bf16.mxu0 0
        %848 = vmatpush1.bf16.msra.mxu0 0
        %849 = vmatprep.subr.bf16.mxu0 0
        %850 = vmatpush1.bf16.msra.mxu0 0
        %851 = vmatprep.subr.bf16.mxu0 0
        %852 = vmatpush1.bf16.msra.mxu0 0
        %853 = vmatprep.subr.bf16.mxu0 0
        %854 = vmatpush1.bf16.msra.mxu0 0
        %855 = vmatprep.mubr.bf16.mxu0 0
        %856 = vmatmul.mubr.bf16.gmra.mrb[0].mxu0 %v818
        %v857 = vpop.f32.mrb[0].mxu0
        %v858 = vadd.f32 0.0, %v857
        %v859 = vpop.f32.mrb[0].mxu0
        %v860 = vpop.f32.mrb[0].mxu0
        %v861 = vpop.f32.mrb[0].mxu0
        %862 = vdwg.mxu0
        %v864 = vsel %vm630, %v723, 0
        %v867 = vsel %vm727, %v412, 0
        %869 = vmatprep.subr.bf16.mxu0 0
        %870 = vmatpush1.bf16.msra.mxu0 %v867
        %871 = vmatprep.subr.bf16.mxu0 0
        %872 = vmatpush1.bf16.msra.mxu0 0
        %873 = vmatprep.subr.bf16.mxu0 0
        %874 = vmatpush1.bf16.msra.mxu0 0
        %875 = vmatprep.subr.bf16.mxu0 0
        %876 = vmatpush1.bf16.msra.mxu0 0
        %877 = vmatprep.subr.bf16.mxu0 0
        %878 = vmatpush1.bf16.msra.mxu0 0
        %879 = vmatprep.subr.bf16.mxu0 0
        %880 = vmatpush1.bf16.msra.mxu0 0
        %881 = vmatprep.subr.bf16.mxu0 0
        %882 = vmatpush1.bf16.msra.mxu0 0
        %883 = vmatprep.subr.bf16.mxu0 0
        %884 = vmatpush1.bf16.msra.mxu0 0
        %885 = vmatprep.subr.bf16.mxu0 0
        %886 = vmatpush1.bf16.msra.mxu0 0
        %887 = vmatprep.subr.bf16.mxu0 0
        %888 = vmatpush1.bf16.msra.mxu0 0
        %889 = vmatprep.subr.bf16.mxu0 0
        %890 = vmatpush1.bf16.msra.mxu0 0
        %891 = vmatprep.subr.bf16.mxu0 0
        %892 = vmatpush1.bf16.msra.mxu0 0
        %893 = vmatprep.subr.bf16.mxu0 0
        %894 = vmatpush1.bf16.msra.mxu0 0
        %895 = vmatprep.subr.bf16.mxu0 0
        %896 = vmatpush1.bf16.msra.mxu0 0
        %897 = vmatprep.subr.bf16.mxu0 0
        %898 = vmatpush1.bf16.msra.mxu0 0
        %899 = vmatprep.subr.bf16.mxu0 0
        %900 = vmatpush1.bf16.msra.mxu0 0
        %901 = vmatprep.mubr.bf16.mxu0 0
        %902 = vmatmul.mubr.bf16.gmra.mrb[0].mxu0 %v864
        %v903 = vpop.f32.mrb[0].mxu0
        %v904 = vadd.f32 0.0, %v903
        %v905 = vpop.f32.mrb[0].mxu0
        %v906 = vpop.f32.mrb[0].mxu0
        %v907 = vpop.f32.mrb[0].mxu0
        %908 = vdwg.mxu0
        %v909 = vld [vmem:[#allocation5] sm:$0xff]
        %v910 = vld [vmem:[#allocation5 + $0x8] sm:$0xff]
        %v911 = vld [vmem:[#allocation5 + $0x10] sm:$0xff]
        %v912 = vld [vmem:[#allocation5 + $0x18] sm:$0xff]
        %914 = vset.pattern.permute.xlu0 0
        %915 = vperm.xlu0 %914, %v652
        %v916 = vpop.permute.xlu0 %915
        %919 = vset.pattern.permute.xlu0 0
        %920 = vperm.xlu0 %919, %v654
        %v921 = vpop.permute.xlu0 %920
        %924 = vset.pattern.permute.xlu0 0
        %925 = vperm.xlu0 %924, %v656
        %v926 = vpop.permute.xlu0 %925
        %929 = vset.pattern.permute.xlu0 0
        %930 = vperm.xlu0 %929, %v658
        %v931 = vpop.permute.xlu0 %930
        %v933 = vmul.f32 %v916, %v909
        %v934 = vmul.f32 %v921, %v910
        %v935 = vmul.f32 %v926, %v911
        %v936 = vmul.f32 %v931, %v912
        %v937 = vadd.f32 %v933, %v766
        %v938 = vadd.f32 %v934, %v812
        %v939 = vadd.f32 %v935, %v858
        %v940 = vadd.f32 %v936, %v904
        %941 = vst.msk [vmem:[#allocation5] sm:$0xff] %vm441, %v937
        %942 = vst.msk [vmem:[#allocation5 + $0x8] sm:$0xff] %vm441, %v938
        %943 = vst.msk [vmem:[#allocation5 + $0x10] sm:$0xff] %vm441, %v939
        %944 = vst.msk [vmem:[#allocation5 + $0x18] sm:$0xff] %vm441, %v940
        %945 = vst.msk [vmem:[#allocation3] sm:$0xff] %vm715, %v643
        %946 = vst.msk [vmem:[#allocation3 + $0x8] sm:$0xff] %vm715, %v644
        %947 = vst.msk [vmem:[#allocation3 + $0x10] sm:$0xff] %vm715, %v645
        %948 = vst.msk [vmem:[#allocation3 + $0x18] sm:$0xff] %vm715, %v646
        // Predicated region
        $region53: #{tpu_custom_call.1} parent=35 // pred_check
          %p949 = pneg %p358
        $region54: #{tpu_custom_call.1} parent=35 // pred_check_branch
          %951 = sbr.rel (%p949) target = $region56
        $region55: #{tpu_custom_call.1} parent=35 // pred_region
          %v952 = vld [vmem:[#allocation4] sm:$0xff]
          %v953 = vld [vmem:[#allocation4 + $0x8] sm:$0xff]
          %v954 = vld [vmem:[#allocation4 + $0x10] sm:$0xff]
          %v955 = vld [vmem:[#allocation4 + $0x18] sm:$0xff]
          %v956 = vrcp.pop %v952
          %v957 = vrcp.pop %v953
          %v958 = vrcp.pop %v954
          %v959 = vrcp.pop %v955
          %v960 = vld [vmem:[#allocation5] sm:$0xff]
          %v961 = vld [vmem:[#allocation5 + $0x8] sm:$0xff]
          %v962 = vld [vmem:[#allocation5 + $0x10] sm:$0xff]
          %v963 = vld [vmem:[#allocation5 + $0x18] sm:$0xff]
          %965 = vset.pattern.permute.xlu0 0
          %966 = vperm.xlu0 %965, %v956
          %v967 = vpop.permute.xlu0 %966
          %970 = vset.pattern.permute.xlu0 0
          %971 = vperm.xlu0 %970, %v957
          %v972 = vpop.permute.xlu0 %971
          %975 = vset.pattern.permute.xlu0 0
          %976 = vperm.xlu0 %975, %v958
          %v977 = vpop.permute.xlu0 %976
          %980 = vset.pattern.permute.xlu0 0
          %981 = vperm.xlu0 %980, %v959
          %v982 = vpop.permute.xlu0 %981
          %v984 = vmul.f32 %v960, %v967
          %v985 = vmul.f32 %v961, %v972
          %v986 = vmul.f32 %v962, %v977
          %v987 = vmul.f32 %v963, %v982
          %988 = vst.msk [vmem:[%s344] sm:$0xff] %vm441, %v984
          %989 = vst.msk [vmem:[%s344 + $0x8] sm:$0xff] %vm441, %v985
          %990 = vst.msk [vmem:[%s344 + $0x10] sm:$0xff] %vm441, %v986
          %991 = vst.msk [vmem:[%s344 + $0x18] sm:$0xff] %vm441, %v987
        $region56: #{tpu_custom_call.1} parent=35 // pred_fallthru
          _
        %s992 = sand.u32 %s165, 1
        %s993 = scalar_lea.sflag [#allocation8], %s992
        %s994 = sand.u32 %s165, 1
        %s995 = smul.addr %s994, 32
        %s996 = scalar_lea.vmem [#allocation12], %s995
        // Predicated region
        $region57: #{tpu_custom_call.1} parent=35 // pred_check
          %p997 = pneg %p175
        $region58: #{tpu_custom_call.1} parent=35 // pred_check_branch
          %999 = sbr.rel (%p997) target = $region60
        $region59: #{tpu_custom_call.1} parent=35 // pred_region
          %s1000 = smul.u32 4, %s29
          %s1002 = ssub.s32 512, 512
          %1003 = vsyncadd %s993, %s1002
          %s1004 = sadd.s32 %s30, %s1000
          %s1005 = smul.addr %s1004, 128
          %s1006 = scalar_lea.hbm %s4, %s1005
          %s1007 = sshll.u32 %s996, 4
          %s1008 = int_to_ptr.vmem [resolvable:$true] %s1007
          %1013 = dma.vmem_to_hbm [thread:$0]  %s1008, 512, %s1006, %s993, 128, 128, 8
        $region60: #{tpu_custom_call.1} parent=35 // pred_fallthru
          _
      $region36: #{tpu_custom_call.1} parent=5 // pred_fallthru
        _
      %p1014 = scmp.le.s32.totalorder 2, %s19
      // Predicated region
      $region61: #{tpu_custom_call.1} parent=5 // pred_check
        %p1015 = pneg %p1014
      $region62: #{tpu_custom_call.1} parent=5 // pred_check_branch
        %1017 = sbr.rel (%p1015) target = $region64
      $region63: #{tpu_custom_call.1} parent=5 // pred_region
        %s1018 = ssub.s32 %s19, 2
        // Predicated region
        $region65: #{tpu_custom_call.1} parent=63 // pred_check
          %p1019 = pneg %p181
        $region66: #{tpu_custom_call.1} parent=63 // pred_check_branch
          %1021 = sbr.rel (%p1019) target = $region68
        $region67: #{tpu_custom_call.1} parent=63 // pred_region
          %s1022 = sand.u32 %s166, 1
          %s1023 = scalar_lea.sflag [#allocation8], %s1022
          %s1024 = sand.u32 %s166, 1
          %s1025 = smul.addr %s1024, 32
          %s1026 = scalar_lea.vmem [#allocation12], %s1025
          %1027 = dma.done %s1023, 512
        $region68: #{tpu_custom_call.1} parent=63 // pred_fallthru
          _
      $region64: #{tpu_custom_call.1} parent=5 // pred_fallthru
        _
    $region6: #{tpu_custom_call.1} parent=1 // loop_footer
      %s23 = sadd.s32 1, %s19
    $region7: #{tpu_custom_call.1} parent=1 // loop_footer_branch
      %18 = sbr.rel target = $region3
    $region8: #{tpu_custom_call.1} parent=1 // loop_exit
      _
    %1028 = vsyncpa [#allocation7], 1
    %s1029 = scalar_lea.sflag [#allocation7], 1
    %1030 = vsyncpa %s1029, 1
    %1031 = vsyncpa [#allocation10], 1
    %s1032 = scalar_lea.sflag [#allocation10], 1
    %1033 = vsyncpa %s1032, 1
    %1034 = vsyncpa [#allocation8], 1
    %s1035 = scalar_lea.sflag [#allocation8], 1
    %1036 = vsyncpa %s1035, 1

</llo_original>
